<compile_context>
chip_gen: v5e
topology: v5e:2x2
jax: 0.10.0
libtpu: 0.0.40
codegen_flags: <defaults>
</compile_context>

<pallas_src>
import jax
import jax.numpy as jnp
from jax.experimental import pallas as pl
from jax.experimental.pallas import tpu as pltpu

HIDDEN = 30


def _round_up(x, m):
    return (x + m - 1) // m * m


def critic_kernel(x_ref, w_ref, b_ref, wo_ref, bo_ref, o_ref):
    # Fused fcs+fca: one MXU dot on the concatenated [TB, state+action] tile,
    # f32 accumulation regardless of input dtype.
    h = jnp.dot(x_ref[...], w_ref[...], preferred_element_type=jnp.float32)
    h = jnp.maximum(h + b_ref[...], 0.0)                   # pre-summed bias + ReLU
    # Output layer has N=1: VPU multiply + lane reduction instead of a second
    # (serially dependent, 1/128-utilized) MXU pass.  bo comes from SMEM.
    q = jnp.sum(h * wo_ref[...], axis=-1) + bo_ref[0, 0]   # [TB]
    # Lane-dense store: (1, TB) slab, batch along the 128-wide lane axis.
    o_ref[...] = q[None, :].astype(o_ref.dtype)


def critic_forward(s, a, params, *, tb=512, compute_dtype=jnp.float32):
    """s: [B, state_dim], a: [B, action_dim] -> [B, 1] (float32)."""
    w_in, b_in, wo_row, bo_s = params
    B = s.shape[0]

    # Fuse the two input streams; optionally cast activations/weights for the MXU.
    x = jnp.concatenate([s, a], axis=-1).astype(compute_dtype)   # [B, F]
    w = w_in.astype(compute_dtype)                               # [F, H]
    F = x.shape[1]
    H = w_in.shape[1]

    # Batch tiling: TB multiple of 8 (and of 128 whenever the grid has >1 tile).
    TB = min(tb, _round_up(B, 8))
    B_pad = _round_up(B, TB)
    if B_pad != B:
        x = jnp.pad(x, ((0, B_pad - B), (0, 0)))
    grid = (B_pad // TB,)

    cost = pl.CostEstimate(
        flops=2 * B_pad * F * H + 3 * B_pad * H,
        transcendentals=0,
        bytes_accessed=(x.size * x.dtype.itemsize
                        + w.size * w.dtype.itemsize
                        + (b_in.size + wo_row.size + bo_s.size) * 4
                        + B_pad * 4),
    )

    out = pl.pallas_call(
        critic_kernel,
        out_shape=jax.ShapeDtypeStruct((1, B_pad), jnp.float32),
        grid_spec=pltpu.PrefetchScalarGridSpec(
            num_scalar_prefetch=0,
            grid=grid,
            in_specs=[
                # fused [s|a] batch tile, streamed/double-buffered over the grid
                pl.BlockSpec((TB, F), lambda i: (i, 0)),
                # fused input weight, bias and output row stay VMEM-resident
                pl.BlockSpec((F, H), lambda i: (0, 0)),
                pl.BlockSpec((1, H), lambda i: (0, 0)),
                pl.BlockSpec((1, H), lambda i: (0, 0)),
                # single scalar output bias lives in SMEM (no padded VMEM tile)
                pl.BlockSpec(memory_space=pltpu.MemorySpace.SMEM),
            ],
            out_specs=pl.BlockSpec((1, TB), lambda i: (0, i)),
        ),
        compiler_params=pltpu.CompilerParams(
            dimension_semantics=("parallel",)),
        cost_estimate=cost,
    )(x, w, b_in, wo_row, bo_s)

    # Back to the PyTorch-visible [B, 1] layout.
    return out[0, :B].reshape(B, 1)


def init_params(key, state_dim, action_dim):
    """Raw per-layer params matching the PyTorch module's __init__."""
    k1, k2, k3, k4 = jax.random.split(key, 4)
    ws = 0.3 * jax.random.normal(k1, (HIDDEN, state_dim), jnp.float32)
    bs = jnp.full((HIDDEN,), 0.1, jnp.float32)
    wa = 0.3 * jax.random.normal(k2, (HIDDEN, action_dim), jnp.float32)
    ba = jnp.full((HIDDEN,), 0.1, jnp.float32)
    # out layer: PyTorch default Linear init, U(-1/sqrt(fan_in), 1/sqrt(fan_in))
    bound = 1.0 / (HIDDEN ** 0.5)
    wo = jax.random.uniform(k3, (1, HIDDEN), jnp.float32, -bound, bound)
    bo = jax.random.uniform(k4, (1,), jnp.float32, -bound, bound)
    return ws, bs, wa, ba, wo, bo


def fuse_params(raw):
    """Fold fcs/fca into a single stacked weight + summed bias for the kernel."""
    ws, bs, wa, ba, wo, bo = raw
    w_in = jnp.concatenate([ws.T, wa.T], axis=0)      # [state+action, HIDDEN]
    b_in = (bs + ba).reshape(1, HIDDEN)               # [1, HIDDEN]
    wo_row = wo.reshape(1, HIDDEN)                    # [1, HIDDEN]
    bo_s = bo.reshape(1, 1).astype(jnp.float32)       # [1, 1] SMEM scalar
    return w_in, b_in, wo_row, bo_s


def reference_forward(s, a, raw):
    """Pure-JAX reference with the original (unfused) PyTorch math."""
    ws, bs, wa, ba, wo, bo = raw
    x = s @ ws.T + bs
    y = a @ wa.T + ba
    return jnp.maximum(x + y, 0.0) @ wo.T + bo


if __name__ == "__main__":
    STATE_DIM, ACTION_DIM = 16, 4
    key = jax.random.PRNGKey(0)
    kp, ks, ka = jax.random.split(key, 3)

    raw = init_params(kp, STATE_DIM, ACTION_DIM)
    params = fuse_params(raw)

    # --- small batch (single tile, full-array blocks) ---------------------
    B = 8
    s = jax.random.normal(ks, (B, STATE_DIM), jnp.float32)
    a = jax.random.normal(ka, (B, ACTION_DIM), jnp.float32)
    q = critic_forward(s, a, params)
    jax.block_until_ready(q)
    q_ref = reference_forward(s, a, raw)
    assert q.shape == (B, 1)
    assert jnp.allclose(q, q_ref, atol=1e-5, rtol=1e-5)

    # --- larger batch: exercises padding + multi-tile grid (TB=512) -------
    B2 = 600
    ks2, ka2 = jax.random.split(jax.random.PRNGKey(1))
    s2 = jax.random.normal(ks2, (B2, STATE_DIM), jnp.float32)
    a2 = jax.random.normal(ka2, (B2, ACTION_DIM), jnp.float32)
    q2 = critic_forward(s2, a2, params)
    jax.block_until_ready(q2)
    q2_ref = reference_forward(s2, a2, raw)
    assert q2.shape == (B2, 1)
    assert jnp.allclose(q2, q2_ref, atol=1e-5, rtol=1e-5)

    # --- bf16 activation/weight path (v6e/v7x memory-roofline option) -----
    q3 = critic_forward(s2, a2, params, compute_dtype=jnp.bfloat16)
    jax.block_until_ready(q3)
    assert jnp.allclose(q3, q2_ref, atol=0.15, rtol=0.05)

    print("KERNEL_OK")
</pallas_src>

<mosaic_0001>
module attributes {stable_mosaic.version = 11 : i64} {
  func.func @critic_kernel(%arg0: i32, %arg1: memref<8x20xf32, #tpu.memory_space<vmem>>, %arg2: memref<20x30xf32, #tpu.memory_space<vmem>>, %arg3: memref<1x30xf32, #tpu.memory_space<vmem>>, %arg4: memref<1x30xf32, #tpu.memory_space<vmem>>, %arg5: memref<1x1xf32, #tpu.memory_space<smem>>, %arg6: memref<1x8xf32, #tpu.memory_space<vmem>>) attributes {dimension_semantics = [#tpu.dimension_semantics<parallel>], iteration_bounds = array<i64: 1>, scalar_prefetch = 0 : i64, scratch_operands = 0 : i64, tpu.core_type = #tpu.core_type<tc>, window_params = [{transform_indices = @transform_0, window_bounds = array<i64: 8, 20>}, {pipeline_mode = #tpu.pipeline_mode<synchronous>, transform_indices = @transform_1, window_bounds = array<i64: 20, 30>}, {pipeline_mode = #tpu.pipeline_mode<synchronous>, transform_indices = @transform_2, window_bounds = array<i64: 1, 30>}, {pipeline_mode = #tpu.pipeline_mode<synchronous>, transform_indices = @transform_3, window_bounds = array<i64: 1, 30>}, {transform_indices = @transform_4, window_bounds = array<i64: 1, 1>}, {transform_indices = @transform_5, window_bounds = array<i64: 1, 8>}]} {
    %c0 = arith.constant 0 : index
    %c0_0 = arith.constant 0 : index
    %0 = vector.load %arg1[%c0, %c0_0] : memref<8x20xf32, #tpu.memory_space<vmem>>, vector<8x20xf32>
    %c0_1 = arith.constant 0 : index
    %c0_2 = arith.constant 0 : index
    %1 = vector.load %arg2[%c0_1, %c0_2] : memref<20x30xf32, #tpu.memory_space<vmem>>, vector<20x30xf32>
    %cst = arith.constant dense<0.000000e+00> : vector<8x30xf32>
    %2 = tpu.matmul %0, %1, %cst {dimension_numbers = #tpu.dot_dimension_numbers<[1], [0], [0], [1], [0, 0, 1, 1], [], []>} : vector<8x20xf32>, vector<20x30xf32>, vector<8x30xf32> -> vector<8x30xf32>
    %c0_3 = arith.constant 0 : index
    %c0_4 = arith.constant 0 : index
    %3 = vector.load %arg3[%c0_3, %c0_4] : memref<1x30xf32, #tpu.memory_space<vmem>>, vector<1x30xf32>
    %4 = vector.broadcast %3 : vector<1x30xf32> to vector<8x30xf32>
    %5 = arith.addf %2, %4 : vector<8x30xf32>
    %cst_5 = arith.constant 0.000000e+00 : f32
    %6 = vector.broadcast %cst_5 : f32 to vector<8x30xf32>
    %7 = arith.maximumf %5, %6 : vector<8x30xf32>
    %c0_6 = arith.constant 0 : index
    %c0_7 = arith.constant 0 : index
    %8 = vector.load %arg4[%c0_6, %c0_7] : memref<1x30xf32, #tpu.memory_space<vmem>>, vector<1x30xf32>
    %9 = vector.broadcast %8 : vector<1x30xf32> to vector<8x30xf32>
    %10 = arith.mulf %7, %9 : vector<8x30xf32>
    %cst_8 = arith.constant dense<0.000000e+00> : vector<8xf32>
    %11 = vector.multi_reduction <add>, %10, %cst_8 [1] : vector<8x30xf32> to vector<8xf32>
    %c0_9 = arith.constant 0 : index
    %c0_10 = arith.constant 0 : index
    %12 = memref.load %arg5[%c0_9, %c0_10] : memref<1x1xf32, #tpu.memory_space<smem>>
    %13 = vector.broadcast %12 : f32 to vector<8xf32>
    %14 = arith.addf %11, %13 : vector<8xf32>
    %15 = vector.shape_cast %14 : vector<8xf32> to vector<1x8xf32>
    %c0_11 = arith.constant 0 : index
    %c0_12 = arith.constant 0 : index
    %16 = vector.load %arg6[%c0_11, %c0_12] : memref<1x8xf32, #tpu.memory_space<vmem>>, vector<1x8xf32>
    tpu.vector_store %arg6[%c0_11, %c0_12], %15 {strides = array<i32>} : memref<1x8xf32, #tpu.memory_space<vmem>>, vector<1x8xf32>,
    return
  }
  func.func @transform_0(%arg0: i32) -> (i32, i32) {
    %c0_i32 = arith.constant 0 : i32
    %c0_i32_0 = arith.constant 0 : i32
    return %arg0, %c0_i32 : i32, i32
  }
  func.func @transform_1(%arg0: i32) -> (i32, i32) {
    %c0_i32 = arith.constant 0 : i32
    %c0_i32_0 = arith.constant 0 : i32
    %c0_i32_1 = arith.constant 0 : i32
    return %c0_i32, %c0_i32_0 : i32, i32
  }
  func.func @transform_2(%arg0: i32) -> (i32, i32) {
    %c0_i32 = arith.constant 0 : i32
    %c0_i32_0 = arith.constant 0 : i32
    %c0_i32_1 = arith.constant 0 : i32
    return %c0_i32, %c0_i32_0 : i32, i32
  }
  func.func @transform_3(%arg0: i32) -> (i32, i32) {
    %c0_i32 = arith.constant 0 : i32
    %c0_i32_0 = arith.constant 0 : i32
    %c0_i32_1 = arith.constant 0 : i32
    return %c0_i32, %c0_i32_0 : i32, i32
  }
  func.func @transform_4(%arg0: i32) -> (i32, i32) {
    %c0_i32 = arith.constant 0 : i32
    %c0_i32_0 = arith.constant 0 : i32
    %c0_i32_1 = arith.constant 0 : i32
    return %c0_i32, %c0_i32_0 : i32, i32
  }
  func.func @transform_5(%arg0: i32) -> (i32, i32) {
    %c0_i32 = arith.constant 0 : i32
    %c0_i32_0 = arith.constant 0 : i32
    return %c0_i32, %arg0 : i32, i32
  }
}

</mosaic_0001>

<llo_original>
// kernel: tpu_custom_call.1
$region0: #{tpu_custom_call.1}
  #allocation0 [shape = 'u32[]', space=smem, size = 0x4, offset = 0x4, fixed_abs, tag = 'smem constant byte address 0x4 - core index']
  #allocation1 [shape = 'u32[72,128]{1,0:T(1,128)}', space=vmem, size = 0x9000, scoped, tag = 'internal scratch']
  #allocation2 [shape = 'f32[1,1]{1,0:T(1,128)S(6)}', space=smem, size = 0x200, scoped, tag = 'scoped memory for tpu_custom_call.1']
  %s0 = inlined_call_operand.hbm [shape: f32[8,20], index: 0, kind: input, shape index: {}]
  %s1 = inlined_call_operand.hbm [shape: f32[20,30], index: 1, kind: input, shape index: {}]
  %s2 = inlined_call_operand.vmem [shape: f32[1,30], index: 2, kind: input, shape index: {}]
  %s3 = inlined_call_operand.vmem [shape: f32[1,30], index: 3, kind: input, shape index: {}]
  %s4 = inlined_call_operand.<no memory space> [shape: f32[1,1], index: 4, kind: input, shape index: {}]
  %s5 = inlined_call_operand.hbm [shape: f32[1,8], index: 5, kind: output, shape index: {}]
  %s6 = sld [smem:[#allocation0]]
  $region38: #{tpu_custom_call.1} parent=0
    _
  %s8 = ssub.s32 1, %s6
  %s9 = scalar_select 0, %s8, %s6
  %10 = sst [smem:[#allocation2]] %s4
  $region1: #{tpu_custom_call.1} parent=0
    #allocation3 [shape = 'u8[4096]{0}', space=vmem, size = 0x1000, scoped, tag = 'input window, operand 0, single buffered']
    #allocation4 [shape = 's32[1]{0}', space=sflag, size = 0x4, scoped, tag = 'scoped memory for tpu_custom_call.1']
    #allocation5 [shape = 's32[1]{0}', space=sflag, size = 0x4, scoped, tag = 'scoped memory for tpu_custom_call.1']
    #allocation6 [shape = 'u8[12288]{0}', space=vmem, size = 0x3000, scoped, tag = 'input window, operand 1, single buffered']
    #allocation7 [shape = 's32[1]{0}', space=sflag, size = 0x4, scoped, tag = 'scoped memory for tpu_custom_call.1']
    #allocation8 [shape = 'u8[512]{0}', space=vmem, size = 0x400, scoped, tag = 'output window, operand 0, single buffered']
    %11 = vsyncpa [#allocation4], 0
    %12 = vsyncpa [#allocation7], 0
    %13 = vsyncpa [#allocation5], 0
    // Predicated region
    $region2: #{tpu_custom_call.1} parent=1 // pred_check
      _
    $region3: #{tpu_custom_call.1} parent=1 // pred_check_branch
      %15 = sbr.rel (0) target = $region5
    $region4: #{tpu_custom_call.1} parent=1 // pred_region
      %17 = vsyncadd [#allocation4], 0
      %s19 = sshll.u32 %s0, 4
      %s20 = int_to_ptr.hbm [resolvable:$true] %s19
      %s21 = sshll.u32 [#allocation3], 4
      %s22 = int_to_ptr.vmem [resolvable:$true] %s21
      %24 = dma.hbm_to_vmem [thread:$0]  %s20, 128, %s22, [#allocation4]
    $region5: #{tpu_custom_call.1} parent=1 // pred_fallthru
      _
    // Predicated region
    $region6: #{tpu_custom_call.1} parent=1 // pred_check
      _
    $region7: #{tpu_custom_call.1} parent=1 // pred_check_branch
      %26 = sbr.rel (0) target = $region9
    $region8: #{tpu_custom_call.1} parent=1 // pred_region
      %28 = vsyncadd [#allocation7], 0
      %s29 = sshll.u32 %s1, 4
      %s30 = int_to_ptr.hbm [resolvable:$true] %s29
      %s31 = sshll.u32 [#allocation6], 4
      %s32 = int_to_ptr.vmem [resolvable:$true] %s31
      %37 = dma.hbm_to_vmem [thread:$0]  %s30, 384, %s32, [#allocation7], 128, 128, 8
    $region9: #{tpu_custom_call.1} parent=1 // pred_fallthru
      _
    // Predicated region
    $region10: #{tpu_custom_call.1} parent=1 // pred_check
      _
    $region11: #{tpu_custom_call.1} parent=1 // pred_check_branch
      %39 = sbr.rel (0) target = $region13
    $region12: #{tpu_custom_call.1} parent=1 // pred_region
      _
    $region13: #{tpu_custom_call.1} parent=1 // pred_fallthru
      _
    // Predicated region
    $region14: #{tpu_custom_call.1} parent=1 // pred_check
      _
    $region15: #{tpu_custom_call.1} parent=1 // pred_check_branch
      %41 = sbr.rel (0) target = $region17
    $region16: #{tpu_custom_call.1} parent=1 // pred_region
      _
    $region17: #{tpu_custom_call.1} parent=1 // pred_fallthru
      _
    // Predicated region
    $region18: #{tpu_custom_call.1} parent=1 // pred_check
      _
    $region19: #{tpu_custom_call.1} parent=1 // pred_check_branch
      %43 = sbr.rel (0) target = $region21
    $region20: #{tpu_custom_call.1} parent=1 // pred_region
      _
    $region21: #{tpu_custom_call.1} parent=1 // pred_fallthru
      _
    // Predicated region
    $region22: #{tpu_custom_call.1} parent=1 // pred_check
      _
    $region23: #{tpu_custom_call.1} parent=1 // pred_check_branch
      %45 = sbr.rel (0) target = $region25
    $region24: #{tpu_custom_call.1} parent=1 // pred_region
      %47 = dma.done [#allocation4], 128
    $region25: #{tpu_custom_call.1} parent=1 // pred_fallthru
      _
    // Predicated region
    $region26: #{tpu_custom_call.1} parent=1 // pred_check
      _
    $region27: #{tpu_custom_call.1} parent=1 // pred_check_branch
      %49 = sbr.rel (0) target = $region29
    $region28: #{tpu_custom_call.1} parent=1 // pred_region
      %51 = dma.done [#allocation7], 384
    $region29: #{tpu_custom_call.1} parent=1 // pred_fallthru
      _
    %v52 = vld [vmem:[#allocation3] sm:$0xff]
    %v53 = vld [vmem:[#allocation6] sm:$0xff]
    %v54 = vld [vmem:[#allocation6 + $0x8] sm:$0xff]
    %v55 = vld [vmem:[#allocation6 + $0x10] sm:$0xf]
    %v56 = vld [vmem:[%s2] sm:$0x1]
    %v58 = vperm.slane %v56, 0
    %vm60 = vcmask 162816
    %v62 = vsel %vm60, %v52, 0
    %vm64 = vcmask 1043456
    %v66 = vsel %vm64, %v55, 0
    %68 = vmatpush.msra.mxu0 0.0
    %69 = vmatpush.msra.mxu0 0.0
    %70 = vmatpush.msra.mxu0 0.0
    %71 = vmatpush.msra.mxu0 0.0
    %72 = vmatpush.msra.mxu0 0.0
    %73 = vmatpush.msra.mxu0 0.0
    %74 = vmatpush.msra.mxu0 0.0
    %75 = vmatpush.msra.mxu0 0.0
    %76 = vmatpush.msra.mxu0 0.0
    %77 = vmatpush.msra.mxu0 0.0
    %78 = vmatpush.msra.mxu0 0.0
    %79 = vmatpush.msra.mxu0 0.0
    %80 = vmatpush.msra.mxu0 0.0
    %81 = vmatpush.msra.mxu0 %v66
    %82 = vmatpush.msra.mxu0 %v54
    %83 = vmatpush.msra.mxu0 %v53
    %84 = vmatmul.f32.gmra.mxu0 %v62
    %v85 = vpop.f32.mrf.mxu0
    %v86 = vadd.f32 %v58, %v85
    %87 = vdwg.mxu0
    %v88 = vmax.f32 %v86, 0.0
    %v89 = vld [vmem:[%s3] sm:$0x1]
    %v91 = vperm.slane %v89, 0
    %v93 = vmul.f32 %v88, %v91
    %vm94 = vcmask 244736
    %v95 = vsel %vm94, %v93, 0.0
    %96 = vadd.xlane.f32.xlu0 %v95
    %v97 = vpop.xlane.xlu0 %96
    %s98 = sld [smem:[#allocation2]]
    %v99 = vstv %s98
    %v100 = vadd.f32 %v97, %v99
    %v102 = vlaneseq
    %v103 = vand.u32 %v102, 127
    %v104 = vperm.slane %v100, %v103
    %vm106 = vcmask 57344
    %107 = vst.msk [vmem:[#allocation8] sm:$0x1] %vm106, %v104
    // Predicated region
    $region30: #{tpu_custom_call.1} parent=1 // pred_check
      _
    $region31: #{tpu_custom_call.1} parent=1 // pred_check_branch
      %109 = sbr.rel (0) target = $region33
    $region32: #{tpu_custom_call.1} parent=1 // pred_region
      %111 = vsyncadd [#allocation5], 0
      %s113 = sshll.u32 [#allocation8], 4
      %s114 = int_to_ptr.vmem [resolvable:$true] %s113
      %s115 = sshll.u32 %s5, 4
      %s116 = int_to_ptr.hbm [resolvable:$true] %s115
      %118 = dma.vmem_to_hbm [thread:$0]  %s114, 16, %s116, [#allocation5]
    $region33: #{tpu_custom_call.1} parent=1 // pred_fallthru
      _
    // Predicated region
    $region34: #{tpu_custom_call.1} parent=1 // pred_check
      _
    $region35: #{tpu_custom_call.1} parent=1 // pred_check_branch
      %120 = sbr.rel (0) target = $region37
    $region36: #{tpu_custom_call.1} parent=1 // pred_region
      %122 = dma.done [#allocation5], 16
    $region37: #{tpu_custom_call.1} parent=1 // pred_fallthru
      _
    %123 = vsyncpa [#allocation4], 1
    %124 = vsyncpa [#allocation7], 1
    %125 = vsyncpa [#allocation5], 1

</llo_original>
